<compile_context>
chip_gen: v5e
topology: v5e:2x2
jax: 0.10.0
libtpu: 0.0.40
codegen_flags: <defaults>
</compile_context>

<pallas_src>
import functools

import numpy as np

import jax
import jax.numpy as jnp
from jax import lax
from jax.experimental import pallas as pl
from jax.experimental.pallas import tpu as pltpu


# ---------------------------------------------------------------------------
# Kernel A: implicit-GEMM grouped radix conv + bias + ReLU
# ---------------------------------------------------------------------------
def _grouped_conv_relu_kernel(x_ref, w_ref, b_ref, o_ref, *, tap_offsets):
    # x_ref: (1, 1, cin_g, Lin)       flattened padded input (lane = Hp*Wp pad)
    # w_ref: (1, n_taps, cout_g, cin_g)
    # b_ref: (1, cout_g, 1)
    # o_ref: (1, 1, cout_g, Lout)     output laid out as (Ho1, Wp) in the lanes
    l_out = o_ref.shape[-1]
    acc = None
    for t, off in enumerate(tap_offsets):
        xt = x_ref[0, 0, :, off:off + l_out]          # static lane shift
        part = jnp.dot(w_ref[0, t], xt, preferred_element_type=jnp.float32)
        acc = part if acc is None else acc + part
    o_ref[0, 0] = jnp.maximum(acc + b_ref[0], 0.0).astype(o_ref.dtype)


# ---------------------------------------------------------------------------
# Kernel B: fused split-sum -> GAP -> fc1 -> ReLU -> fc2 -> rSoftMax -> recombine
# ---------------------------------------------------------------------------
def _split_attention_kernel(y_ref, ones_ref, w1_ref, b1_ref, w2_ref, b2_ref,
                            o_ref, *, radix, inv_hw):
    # y_ref : (bt, radix, C, L)   post-ReLU conv output for a batch tile
    # ones_ref: (L, 1)            masked ones column (dead lanes = 0)
    # w1_ref: (C, inter)          fc1 weight (block-diagonal, transposed)
    # b1_ref: (1, inter)
    # w2_ref: (radix, inter, C)   fc2 weight, rSoftMax-permuted, transposed
    # b2_ref: (radix, 1, C)
    # o_ref : (bt, C, L)
    bt, _, c, l = y_ref.shape
    y = y_ref[...]
    ones_col = ones_ref[...]

    # Global average pool of the radix sum, as an MXU contraction per split
    # (f32 accumulation even with bf16 inputs); dead lanes contribute zero.
    gap = None
    for rr in range(radix):
        part = jnp.dot(y[:, rr].reshape(bt * c, l), ones_col,
                       preferred_element_type=jnp.float32)
        gap = part if gap is None else gap + part
    gap = gap.reshape(bt, c) * inv_hw                      # (bt, C)

    # fc1 (grouped 1x1 conv as dense block-diagonal matmul) + ReLU.
    hid = jnp.dot(gap, w1_ref[...], preferred_element_type=jnp.float32)
    hid = jnp.maximum(hid + b1_ref[...], 0.0)              # (bt, inter)

    # fc2 logits: one (bt, C) slab per radix split.
    logits = [
        jnp.dot(hid, w2_ref[rr], preferred_element_type=jnp.float32) + b2_ref[rr]
        for rr in range(radix)
    ]

    if radix > 1:
        m = logits[0]
        for rr in range(1, radix):
            m = jnp.maximum(m, logits[rr])
        exps = [jnp.exp(lg - m) for lg in logits]
        den = exps[0]
        for rr in range(1, radix):
            den = den + exps[rr]
        inv = pl.reciprocal(den, approx=True)              # EUP slot
        att = [e * inv for e in exps]
    else:
        att = [jax.nn.sigmoid(logits[0])]

    out = att[0][:, :, None] * y[:, 0]
    for rr in range(1, radix):
        out = out + att[rr][:, :, None] * y[:, rr]
    o_ref[...] = out.astype(o_ref.dtype)


# ---------------------------------------------------------------------------
# Wrapper helpers
# ---------------------------------------------------------------------------
def _round_up(v, m):
    return ((v + m - 1) // m) * m


def _pick_batch_tile(n, max_tile):
    # Largest divisor of n <= max_tile that still leaves >= 2 grid steps
    # (keeps both TensorCores busy on v7x).
    for cand in range(min(max_tile, n), 0, -1):
        if n % cand == 0 and n // cand >= 2:
            return cand
    return 1


def _grouped_1x1_to_dense(w, cardinality):
    """(Cout, Cin_g, 1, 1) grouped 1x1 conv weight -> dense block-diag (Cout, Cin)."""
    cout, cin_g = w.shape[0], w.shape[1]
    blocks = w[:, :, 0, 0].reshape(cardinality, cout // cardinality, cin_g)
    return jax.scipy.linalg.block_diag(*[blocks[g] for g in range(cardinality)])


# ---------------------------------------------------------------------------
# Wrapper
# ---------------------------------------------------------------------------
def splat_conv2d(x, params, *, channels, kernel_size, stride=(1, 1),
                 padding=(0, 0), dilation=(1, 1), groups=1, radix=2,
                 mxu_dtype=None, batch_tile=8):
    """SplAtConv2d forward (default config: bias=True, no BN, no DropBlock)."""
    conv_w = params["conv_w"]   # (channels*radix, Cin//(groups*radix), KH, KW)
    conv_b = params["conv_b"]   # (channels*radix,)
    fc1_w = params["fc1_w"]     # (inter, channels//groups, 1, 1)
    fc1_b = params["fc1_b"]     # (inter,)
    fc2_w = params["fc2_w"]     # (channels*radix, inter//groups, 1, 1)
    fc2_b = params["fc2_b"]     # (channels*radix,)

    n, cin, h, w_in = x.shape
    kh, kw = kernel_size
    sh, sw = stride
    ph, pw = padding
    dh, dw = dilation
    card = groups
    rx = radix
    c = channels
    g_total = groups * radix
    cin_g = cin // g_total
    cout_g = (channels * radix) // g_total
    inter = fc1_w.shape[0]
    if mxu_dtype is None:
        mxu_dtype = x.dtype          # pass jnp.bfloat16 on v6e/v7x for MXU peak

    hp, wp = h + 2 * ph, w_in + 2 * pw
    ho1 = hp - dh * (kh - 1)         # stride-1 output height
    wo1 = wp - dw * (kw - 1)         # stride-1 output width
    ho = (ho1 - 1) // sh + 1
    wo = (wo1 - 1) // sw + 1

    # Kernel-A output lane layout: stride-1 rows laid out as (ho1, wp), so every
    # conv tap is a pure static lane shift of the flattened padded input.
    l_valid_a = ho1 * wp
    l_out = _round_up(l_valid_a, 128)
    max_off = (kh - 1) * dh * wp + (kw - 1) * dw
    l_in = _round_up(l_out + max_off, 128)
    tap_offsets = tuple(ikh * dh * wp + ikw * dw
                        for ikh in range(kh) for ikw in range(kw))
    n_taps = kh * kw

    # --- layout plumbing only (bytes ~= input size; no im2col inflation) ----
    x_pad = jnp.pad(x, ((0, 0), (0, 0), (ph, ph), (pw, pw)))
    x_flat = x_pad.reshape(n, g_total, cin_g, hp * wp)
    x_flat = jnp.pad(x_flat, ((0, 0), (0, 0), (0, 0), (0, l_in - hp * wp)))
    x_flat = x_flat.astype(mxu_dtype)

    w_g = conv_w.reshape(g_total, cout_g, cin_g, n_taps)
    w_g = jnp.transpose(w_g, (0, 3, 1, 2)).astype(mxu_dtype)   # (g, tap, oc, ic)
    b_g = conv_b.reshape(g_total, cout_g, 1).astype(jnp.float32)

    # --- Kernel A: implicit-GEMM grouped conv + bias + ReLU -----------------
    # Grid (group, batch): weight block index constant along the inner batch
    # axis -> per-group weights stay resident in VMEM across the batch loop.
    y = pl.pallas_call(
        functools.partial(_grouped_conv_relu_kernel, tap_offsets=tap_offsets),
        out_shape=jax.ShapeDtypeStruct((n, g_total, cout_g, l_out), mxu_dtype),
        grid=(g_total, n),
        in_specs=[
            pl.BlockSpec((1, 1, cin_g, l_in), lambda g, i: (i, g, 0, 0)),
            pl.BlockSpec((1, n_taps, cout_g, cin_g), lambda g, i: (g, 0, 0, 0)),
            pl.BlockSpec((1, cout_g, 1), lambda g, i: (g, 0, 0)),
        ],
        out_specs=pl.BlockSpec((1, 1, cout_g, l_out), lambda g, i: (i, g, 0, 0)),
        compiler_params=pltpu.CompilerParams(
            dimension_semantics=("parallel", "parallel"),
            vmem_limit_bytes=32 * 1024 * 1024),
    )(x_flat, w_g, b_g)

    # Grouped-conv channel order is (radix, cardinality, local), so split r is
    # exactly channels [r*C, (r+1)*C): this reshape is a free view.
    y = y.reshape(n, rx, c, l_out)

    if (sh, sw) != (1, 1):
        # TODO(synk): stride > 1 subsamples the stride-1 output in the wrapper
        # (extra HBM relayout); an in-kernel strided gather would avoid it.
        y_sp = y[..., :ho1 * wp].reshape(n, rx, c, ho1, wp)
        y_sp = y_sp[:, :, :, 0:sh * (ho - 1) + 1:sh, 0:sw * (wo - 1) + 1:sw]
        l_valid_b = ho * wo
        l_b = _round_up(l_valid_b, 128)
        y_b = jnp.pad(y_sp.reshape(n, rx, c, l_valid_b),
                      ((0, 0), (0, 0), (0, 0), (0, l_b - l_valid_b)))
        wp_b, wo_b = wo, wo
    else:
        y_b, l_b = y, l_out
        wp_b, wo_b = wp, wo
        l_valid_b = ho * wp

    # Masked ones column for the GAP contraction: dead lanes (width padding and
    # 128-rounding) contribute exactly zero (mandatory for correctness, since
    # ReLU(bias) > 0 can appear in garbage lanes).
    lane = np.arange(l_b)
    valid = (lane < l_valid_b) & ((lane % wp_b) < wo_b)
    ones_col = jnp.asarray(valid.astype(np.float32).reshape(l_b, 1)).astype(mxu_dtype)

    # --- fc1 / fc2 grouped 1x1 convs as dense block-diagonal matrices -------
    w1_t = jnp.transpose(_grouped_1x1_to_dense(fc1_w, card)).astype(jnp.float32)   # (C, inter)
    b1_row = fc1_b.reshape(1, inter).astype(jnp.float32)
    w2_dense = _grouped_1x1_to_dense(fc2_w, card)                                   # (R*C, inter)

    # Permute fc2 rows so row (r, c) holds the logit rSoftMax assigns to
    # (split r, output channel c), matching
    #   view(B, card, radix, -1).transpose(1, 2).softmax(1).reshape(B, -1).
    c_idx = np.arange(c)
    gc_idx = c_idx // (c // card)
    cl_idx = c_idx % (c // card)
    perm = np.stack([gc_idx * (rx * (c // card)) + r_i * (c // card) + cl_idx
                     for r_i in range(rx)], axis=0).reshape(-1)                     # (R*C,)
    w2_t = jnp.transpose(w2_dense[perm].reshape(rx, c, inter),
                         (0, 2, 1)).astype(jnp.float32)                             # (R, inter, C)
    b2_row = fc2_b[perm].reshape(rx, 1, c).astype(jnp.float32)

    # --- Kernel B: fused attention path + recombination (batch-tiled grid) --
    bt = _pick_batch_tile(n, batch_tile)
    out_full = pl.pallas_call(
        functools.partial(_split_attention_kernel, radix=rx, inv_hw=1.0 / (ho * wo)),
        out_shape=jax.ShapeDtypeStruct((n, c, l_b), x.dtype),
        grid=(n // bt,),
        in_specs=[
            pl.BlockSpec((bt, rx, c, l_b), lambda i: (i, 0, 0, 0)),
            pl.BlockSpec((l_b, 1), lambda i: (0, 0)),
            pl.BlockSpec((c, inter), lambda i: (0, 0)),
            pl.BlockSpec((1, inter), lambda i: (0, 0)),
            pl.BlockSpec((rx, inter, c), lambda i: (0, 0, 0)),
            pl.BlockSpec((rx, 1, c), lambda i: (0, 0, 0)),
        ],
        out_specs=pl.BlockSpec((bt, c, l_b), lambda i: (i, 0, 0)),
        compiler_params=pltpu.CompilerParams(
            dimension_semantics=("parallel",),
            vmem_limit_bytes=32 * 1024 * 1024),
    )(y_b, ones_col, w1_t, b1_row, w2_t, b2_row)

    out = out_full[..., :ho * wp_b].reshape(n, c, ho, wp_b)[..., :wo]
    return out


# ---------------------------------------------------------------------------
# Pure-JAX reference (mirrors the PyTorch forward)
# ---------------------------------------------------------------------------
def splat_conv2d_ref(x, params, *, channels, stride, padding, dilation,
                     groups, radix):
    conv_w, conv_b = params["conv_w"], params["conv_b"]
    fc1_w, fc1_b = params["fc1_w"], params["fc1_b"]
    fc2_w, fc2_b = params["fc2_w"], params["fc2_b"]
    card = groups
    n = x.shape[0]
    c = channels
    hp = lax.Precision.HIGHEST

    y = lax.conv_general_dilated(
        x, conv_w, window_strides=stride,
        padding=[(padding[0], padding[0]), (padding[1], padding[1])],
        rhs_dilation=dilation, dimension_numbers=("NCHW", "OIHW", "NCHW"),
        feature_group_count=groups * radix, precision=hp)
    y = jnp.maximum(y + conv_b[None, :, None, None], 0.0)

    if radix > 1:
        splits = [y[:, i * c:(i + 1) * c] for i in range(radix)]
        gap = splits[0]
        for s in splits[1:]:
            gap = gap + s
    else:
        splits = [y]
        gap = y
    gap = jnp.mean(gap, axis=(2, 3), keepdims=True)            # (N, C, 1, 1)

    hid = lax.conv_general_dilated(
        gap, fc1_w, (1, 1), "VALID",
        dimension_numbers=("NCHW", "OIHW", "NCHW"),
        feature_group_count=card, precision=hp)
    hid = jnp.maximum(hid + fc1_b[None, :, None, None], 0.0)

    att = lax.conv_general_dilated(
        hid, fc2_w, (1, 1), "VALID",
        dimension_numbers=("NCHW", "OIHW", "NCHW"),
        feature_group_count=card, precision=hp)
    att = (att + fc2_b[None, :, None, None])[:, :, 0, 0]        # (N, C*R)

    if radix > 1:
        a = att.reshape(n, card, radix, -1)
        a = jnp.transpose(a, (0, 2, 1, 3))
        a = jax.nn.softmax(a, axis=1)
        a = a.reshape(n, -1)
        attens = [a[:, i * c:(i + 1) * c] for i in range(radix)]
    else:
        attens = [jax.nn.sigmoid(att)]

    out = attens[0][:, :, None, None] * splits[0]
    for i in range(1, radix):
        out = out + attens[i][:, :, None, None] * splits[i]
    return out


if __name__ == "__main__":
    base_key = jax.random.PRNGKey(0)
    configs = [
        # primary config (matches the module defaults used in the model)
        dict(n=2, cin=4, h=16, w=16, channels=4, groups=1, radix=2,
             kernel_size=(3, 3), stride=(1, 1), padding=(1, 1), dilation=(1, 1)),
        # cardinality > 1: exercises the fc1/fc2 block-diag + rSoftMax perm
        dict(n=2, cin=8, h=10, w=10, channels=8, groups=2, radix=2,
             kernel_size=(3, 3), stride=(1, 1), padding=(1, 1), dilation=(1, 1)),
        # radix = 1 (sigmoid path) + stride 2 fallback
        dict(n=2, cin=8, h=12, w=12, channels=8, groups=1, radix=1,
             kernel_size=(3, 3), stride=(2, 2), padding=(1, 1), dilation=(1, 1)),
    ]

    for idx, cfg in enumerate(configs):
        key = jax.random.fold_in(base_key, idx)
        keys = jax.random.split(key, 7)
        n, cin, h, w = cfg["n"], cfg["cin"], cfg["h"], cfg["w"]
        channels, groups, radix = cfg["channels"], cfg["groups"], cfg["radix"]
        kh, kw = cfg["kernel_size"]
        g_total = groups * radix
        inter = max(cin * radix // 4, 32)

        x = jax.random.normal(keys[0], (n, cin, h, w), dtype=jnp.float32)
        params = {
            "conv_w": 0.2 * jax.random.normal(
                keys[1], (channels * radix, cin // g_total, kh, kw), jnp.float32),
            "conv_b": 0.1 * jax.random.normal(keys[2], (channels * radix,), jnp.float32),
            "fc1_w": 0.2 * jax.random.normal(
                keys[3], (inter, channels // groups, 1, 1), jnp.float32),
            "fc1_b": 0.1 * jax.random.normal(keys[4], (inter,), jnp.float32),
            "fc2_w": 0.2 * jax.random.normal(
                keys[5], (channels * radix, inter // groups, 1, 1), jnp.float32),
            "fc2_b": 0.1 * jax.random.normal(keys[6], (channels * radix,), jnp.float32),
        }

        out = splat_conv2d(x, params, channels=channels,
                           kernel_size=cfg["kernel_size"], stride=cfg["stride"],
                           padding=cfg["padding"], dilation=cfg["dilation"],
                           groups=groups, radix=radix)
        out = jax.block_until_ready(out)

        ref = splat_conv2d_ref(x, params, channels=channels, stride=cfg["stride"],
                               padding=cfg["padding"], dilation=cfg["dilation"],
                               groups=groups, radix=radix)

        assert out.shape == ref.shape, (idx, out.shape, ref.shape)
        max_err = float(jnp.max(jnp.abs(out - ref)))
        assert jnp.allclose(out, ref, atol=5e-3, rtol=5e-3), (idx, max_err)

    print("KERNEL_OK")
</pallas_src>

<mosaic_0001>
module attributes {stable_mosaic.version = 11 : i64} {
  func.func @_grouped_conv_relu_kernel(%arg0: i32, %arg1: i32, %arg2: memref<1x1x2x512xf32, #tpu.memory_space<vmem>>, %arg3: memref<1x9x4x2xf32, #tpu.memory_space<vmem>>, %arg4: memref<1x4x1xf32, #tpu.memory_space<vmem>>, %arg5: memref<1x1x4x384xf32, #tpu.memory_space<vmem>>) attributes {dimension_semantics = [#tpu.dimension_semantics<parallel>, #tpu.dimension_semantics<parallel>], iteration_bounds = array<i64: 2, 2>, scalar_prefetch = 0 : i64, scratch_operands = 0 : i64, tpu.core_type = #tpu.core_type<tc>, window_params = [{transform_indices = @transform_0, window_bounds = array<i64: 1, 1, 2, 512>}, {transform_indices = @transform_1, window_bounds = array<i64: 1, 9, 4, 2>}, {transform_indices = @transform_2, window_bounds = array<i64: 1, 4, 1>}, {transform_indices = @transform_3, window_bounds = array<i64: 1, 1, 4, 384>}]} {
    %c0 = arith.constant 0 : index
    %c0_0 = arith.constant 0 : index
    %c0_1 = arith.constant 0 : index
    %c0_2 = arith.constant 0 : index
    %0 = vector.load %arg2[%c0, %c0_0, %c0_1, %c0_2] : memref<1x1x2x512xf32, #tpu.memory_space<vmem>>, vector<1x1x2x384xf32>
    %1 = vector.shape_cast %0 : vector<1x1x2x384xf32> to vector<2x384xf32>
    %c0_3 = arith.constant 0 : index
    %c0_4 = arith.constant 0 : index
    %c0_5 = arith.constant 0 : index
    %c0_6 = arith.constant 0 : index
    %2 = vector.load %arg3[%c0_3, %c0_4, %c0_5, %c0_6] : memref<1x9x4x2xf32, #tpu.memory_space<vmem>>, vector<1x1x4x2xf32>
    %3 = vector.shape_cast %2 : vector<1x1x4x2xf32> to vector<4x2xf32>
    %cst = arith.constant dense<0.000000e+00> : vector<4x384xf32>
    %4 = tpu.matmul %3, %1, %cst {dimension_numbers = #tpu.dot_dimension_numbers<[1], [0], [0], [1], [0, 0, 1, 1], [], []>} : vector<4x2xf32>, vector<2x384xf32>, vector<4x384xf32> -> vector<4x384xf32>
    %c0_7 = arith.constant 0 : index
    %c0_8 = arith.constant 0 : index
    %c0_9 = arith.constant 0 : index
    %c1 = arith.constant 1 : index
    %5 = vector.load %arg2[%c0_7, %c0_8, %c0_9, %c1] : memref<1x1x2x512xf32, #tpu.memory_space<vmem>>, vector<1x1x2x384xf32>
    %6 = vector.shape_cast %5 : vector<1x1x2x384xf32> to vector<2x384xf32>
    %c0_10 = arith.constant 0 : index
    %c1_11 = arith.constant 1 : index
    %c0_12 = arith.constant 0 : index
    %c0_13 = arith.constant 0 : index
    %7 = vector.load %arg3[%c0_10, %c1_11, %c0_12, %c0_13] : memref<1x9x4x2xf32, #tpu.memory_space<vmem>>, vector<1x1x4x2xf32>
    %8 = vector.shape_cast %7 : vector<1x1x4x2xf32> to vector<4x2xf32>
    %cst_14 = arith.constant dense<0.000000e+00> : vector<4x384xf32>
    %9 = tpu.matmul %8, %6, %cst_14 {dimension_numbers = #tpu.dot_dimension_numbers<[1], [0], [0], [1], [0, 0, 1, 1], [], []>} : vector<4x2xf32>, vector<2x384xf32>, vector<4x384xf32> -> vector<4x384xf32>
    %10 = arith.addf %4, %9 : vector<4x384xf32>
    %c0_15 = arith.constant 0 : index
    %c0_16 = arith.constant 0 : index
    %c0_17 = arith.constant 0 : index
    %c2 = arith.constant 2 : index
    %11 = vector.load %arg2[%c0_15, %c0_16, %c0_17, %c2] : memref<1x1x2x512xf32, #tpu.memory_space<vmem>>, vector<1x1x2x384xf32>
    %12 = vector.shape_cast %11 : vector<1x1x2x384xf32> to vector<2x384xf32>
    %c0_18 = arith.constant 0 : index
    %c2_19 = arith.constant 2 : index
    %c0_20 = arith.constant 0 : index
    %c0_21 = arith.constant 0 : index
    %13 = vector.load %arg3[%c0_18, %c2_19, %c0_20, %c0_21] : memref<1x9x4x2xf32, #tpu.memory_space<vmem>>, vector<1x1x4x2xf32>
    %14 = vector.shape_cast %13 : vector<1x1x4x2xf32> to vector<4x2xf32>
    %cst_22 = arith.constant dense<0.000000e+00> : vector<4x384xf32>
    %15 = tpu.matmul %14, %12, %cst_22 {dimension_numbers = #tpu.dot_dimension_numbers<[1], [0], [0], [1], [0, 0, 1, 1], [], []>} : vector<4x2xf32>, vector<2x384xf32>, vector<4x384xf32> -> vector<4x384xf32>
    %16 = arith.addf %10, %15 : vector<4x384xf32>
    %c0_23 = arith.constant 0 : index
    %c0_24 = arith.constant 0 : index
    %c0_25 = arith.constant 0 : index
    %c18 = arith.constant 18 : index
    %17 = vector.load %arg2[%c0_23, %c0_24, %c0_25, %c18] : memref<1x1x2x512xf32, #tpu.memory_space<vmem>>, vector<1x1x2x384xf32>
    %18 = vector.shape_cast %17 : vector<1x1x2x384xf32> to vector<2x384xf32>
    %c0_26 = arith.constant 0 : index
    %c3 = arith.constant 3 : index
    %c0_27 = arith.constant 0 : index
    %c0_28 = arith.constant 0 : index
    %19 = vector.load %arg3[%c0_26, %c3, %c0_27, %c0_28] : memref<1x9x4x2xf32, #tpu.memory_space<vmem>>, vector<1x1x4x2xf32>
    %20 = vector.shape_cast %19 : vector<1x1x4x2xf32> to vector<4x2xf32>
    %cst_29 = arith.constant dense<0.000000e+00> : vector<4x384xf32>
    %21 = tpu.matmul %20, %18, %cst_29 {dimension_numbers = #tpu.dot_dimension_numbers<[1], [0], [0], [1], [0, 0, 1, 1], [], []>} : vector<4x2xf32>, vector<2x384xf32>, vector<4x384xf32> -> vector<4x384xf32>
    %22 = arith.addf %16, %21 : vector<4x384xf32>
    %c0_30 = arith.constant 0 : index
    %c0_31 = arith.constant 0 : index
    %c0_32 = arith.constant 0 : index
    %c19 = arith.constant 19 : index
    %23 = vector.load %arg2[%c0_30, %c0_31, %c0_32, %c19] : memref<1x1x2x512xf32, #tpu.memory_space<vmem>>, vector<1x1x2x384xf32>
    %24 = vector.shape_cast %23 : vector<1x1x2x384xf32> to vector<2x384xf32>
    %c0_33 = arith.constant 0 : index
    %c4 = arith.constant 4 : index
    %c0_34 = arith.constant 0 : index
    %c0_35 = arith.constant 0 : index
    %25 = vector.load %arg3[%c0_33, %c4, %c0_34, %c0_35] : memref<1x9x4x2xf32, #tpu.memory_space<vmem>>, vector<1x1x4x2xf32>
    %26 = vector.shape_cast %25 : vector<1x1x4x2xf32> to vector<4x2xf32>
    %cst_36 = arith.constant dense<0.000000e+00> : vector<4x384xf32>
    %27 = tpu.matmul %26, %24, %cst_36 {dimension_numbers = #tpu.dot_dimension_numbers<[1], [0], [0], [1], [0, 0, 1, 1], [], []>} : vector<4x2xf32>, vector<2x384xf32>, vector<4x384xf32> -> vector<4x384xf32>
    %28 = arith.addf %22, %27 : vector<4x384xf32>
    %c0_37 = arith.constant 0 : index
    %c0_38 = arith.constant 0 : index
    %c0_39 = arith.constant 0 : index
    %c20 = arith.constant 20 : index
    %29 = vector.load %arg2[%c0_37, %c0_38, %c0_39, %c20] : memref<1x1x2x512xf32, #tpu.memory_space<vmem>>, vector<1x1x2x384xf32>
    %30 = vector.shape_cast %29 : vector<1x1x2x384xf32> to vector<2x384xf32>
    %c0_40 = arith.constant 0 : index
    %c5 = arith.constant 5 : index
    %c0_41 = arith.constant 0 : index
    %c0_42 = arith.constant 0 : index
    %31 = vector.load %arg3[%c0_40, %c5, %c0_41, %c0_42] : memref<1x9x4x2xf32, #tpu.memory_space<vmem>>, vector<1x1x4x2xf32>
    %32 = vector.shape_cast %31 : vector<1x1x4x2xf32> to vector<4x2xf32>
    %cst_43 = arith.constant dense<0.000000e+00> : vector<4x384xf32>
    %33 = tpu.matmul %32, %30, %cst_43 {dimension_numbers = #tpu.dot_dimension_numbers<[1], [0], [0], [1], [0, 0, 1, 1], [], []>} : vector<4x2xf32>, vector<2x384xf32>, vector<4x384xf32> -> vector<4x384xf32>
    %34 = arith.addf %28, %33 : vector<4x384xf32>
    %c0_44 = arith.constant 0 : index
    %c0_45 = arith.constant 0 : index
    %c0_46 = arith.constant 0 : index
    %c36 = arith.constant 36 : index
    %35 = vector.load %arg2[%c0_44, %c0_45, %c0_46, %c36] : memref<1x1x2x512xf32, #tpu.memory_space<vmem>>, vector<1x1x2x384xf32>
    %36 = vector.shape_cast %35 : vector<1x1x2x384xf32> to vector<2x384xf32>
    %c0_47 = arith.constant 0 : index
    %c6 = arith.constant 6 : index
    %c0_48 = arith.constant 0 : index
    %c0_49 = arith.constant 0 : index
    %37 = vector.load %arg3[%c0_47, %c6, %c0_48, %c0_49] : memref<1x9x4x2xf32, #tpu.memory_space<vmem>>, vector<1x1x4x2xf32>
    %38 = vector.shape_cast %37 : vector<1x1x4x2xf32> to vector<4x2xf32>
    %cst_50 = arith.constant dense<0.000000e+00> : vector<4x384xf32>
    %39 = tpu.matmul %38, %36, %cst_50 {dimension_numbers = #tpu.dot_dimension_numbers<[1], [0], [0], [1], [0, 0, 1, 1], [], []>} : vector<4x2xf32>, vector<2x384xf32>, vector<4x384xf32> -> vector<4x384xf32>
    %40 = arith.addf %34, %39 : vector<4x384xf32>
    %c0_51 = arith.constant 0 : index
    %c0_52 = arith.constant 0 : index
    %c0_53 = arith.constant 0 : index
    %c37 = arith.constant 37 : index
    %41 = vector.load %arg2[%c0_51, %c0_52, %c0_53, %c37] : memref<1x1x2x512xf32, #tpu.memory_space<vmem>>, vector<1x1x2x384xf32>
    %42 = vector.shape_cast %41 : vector<1x1x2x384xf32> to vector<2x384xf32>
    %c0_54 = arith.constant 0 : index
    %c7 = arith.constant 7 : index
    %c0_55 = arith.constant 0 : index
    %c0_56 = arith.constant 0 : index
    %43 = vector.load %arg3[%c0_54, %c7, %c0_55, %c0_56] : memref<1x9x4x2xf32, #tpu.memory_space<vmem>>, vector<1x1x4x2xf32>
    %44 = vector.shape_cast %43 : vector<1x1x4x2xf32> to vector<4x2xf32>
    %cst_57 = arith.constant dense<0.000000e+00> : vector<4x384xf32>
    %45 = tpu.matmul %44, %42, %cst_57 {dimension_numbers = #tpu.dot_dimension_numbers<[1], [0], [0], [1], [0, 0, 1, 1], [], []>} : vector<4x2xf32>, vector<2x384xf32>, vector<4x384xf32> -> vector<4x384xf32>
    %46 = arith.addf %40, %45 : vector<4x384xf32>
    %c0_58 = arith.constant 0 : index
    %c0_59 = arith.constant 0 : index
    %c0_60 = arith.constant 0 : index
    %c38 = arith.constant 38 : index
    %47 = vector.load %arg2[%c0_58, %c0_59, %c0_60, %c38] : memref<1x1x2x512xf32, #tpu.memory_space<vmem>>, vector<1x1x2x384xf32>
    %48 = vector.shape_cast %47 : vector<1x1x2x384xf32> to vector<2x384xf32>
    %c0_61 = arith.constant 0 : index
    %c8 = arith.constant 8 : index
    %c0_62 = arith.constant 0 : index
    %c0_63 = arith.constant 0 : index
    %49 = vector.load %arg3[%c0_61, %c8, %c0_62, %c0_63] : memref<1x9x4x2xf32, #tpu.memory_space<vmem>>, vector<1x1x4x2xf32>
    %50 = vector.shape_cast %49 : vector<1x1x4x2xf32> to vector<4x2xf32>
    %cst_64 = arith.constant dense<0.000000e+00> : vector<4x384xf32>
    %51 = tpu.matmul %50, %48, %cst_64 {dimension_numbers = #tpu.dot_dimension_numbers<[1], [0], [0], [1], [0, 0, 1, 1], [], []>} : vector<4x2xf32>, vector<2x384xf32>, vector<4x384xf32> -> vector<4x384xf32>
    %52 = arith.addf %46, %51 : vector<4x384xf32>
    %c0_65 = arith.constant 0 : index
    %c0_66 = arith.constant 0 : index
    %c0_67 = arith.constant 0 : index
    %53 = vector.load %arg4[%c0_65, %c0_66, %c0_67] : memref<1x4x1xf32, #tpu.memory_space<vmem>>, vector<1x4x1xf32>
    %54 = vector.shape_cast %53 : vector<1x4x1xf32> to vector<4x1xf32>
    %55 = vector.broadcast %54 : vector<4x1xf32> to vector<4x384xf32>
    %56 = arith.addf %52, %55 : vector<4x384xf32>
    %cst_68 = arith.constant 0.000000e+00 : f32
    %57 = vector.broadcast %cst_68 : f32 to vector<4x384xf32>
    %58 = arith.maximumf %56, %57 : vector<4x384xf32>
    %c0_69 = arith.constant 0 : index
    %c0_70 = arith.constant 0 : index
    %c0_71 = arith.constant 0 : index
    %c0_72 = arith.constant 0 : index
    %59 = vector.load %arg5[%c0_69, %c0_70, %c0_71, %c0_72] : memref<1x1x4x384xf32, #tpu.memory_space<vmem>>, vector<1x1x4x384xf32>
    %60 = vector.shape_cast %59 : vector<1x1x4x384xf32> to vector<4x384xf32>
    %61 = vector.shape_cast %58 : vector<4x384xf32> to vector<1x1x4x384xf32>
    tpu.vector_store %arg5[%c0_69, %c0_70, %c0_71, %c0_72], %61 {strides = array<i32>} : memref<1x1x4x384xf32, #tpu.memory_space<vmem>>, vector<1x1x4x384xf32>,
    return
  }
  func.func @transform_0(%arg0: i32, %arg1: i32) -> (i32, i32, i32, i32) {
    %c0_i32 = arith.constant 0 : i32
    %c0_i32_0 = arith.constant 0 : i32
    %c0_i32_1 = arith.constant 0 : i32
    return %arg1, %arg0, %c0_i32, %c0_i32_0 : i32, i32, i32, i32
  }
  func.func @transform_1(%arg0: i32, %arg1: i32) -> (i32, i32, i32, i32) {
    %c0_i32 = arith.constant 0 : i32
    %c0_i32_0 = arith.constant 0 : i32
    %c0_i32_1 = arith.constant 0 : i32
    %c0_i32_2 = arith.constant 0 : i32
    return %arg0, %c0_i32, %c0_i32_0, %c0_i32_1 : i32, i32, i32, i32
  }
  func.func @transform_2(%arg0: i32, %arg1: i32) -> (i32, i32, i32) {
    %c0_i32 = arith.constant 0 : i32
    %c0_i32_0 = arith.constant 0 : i32
    %c0_i32_1 = arith.constant 0 : i32
    return %arg0, %c0_i32, %c0_i32_0 : i32, i32, i32
  }
  func.func @transform_3(%arg0: i32, %arg1: i32) -> (i32, i32, i32, i32) {
    %c0_i32 = arith.constant 0 : i32
    %c0_i32_0 = arith.constant 0 : i32
    %c0_i32_1 = arith.constant 0 : i32
    return %arg1, %arg0, %c0_i32, %c0_i32_0 : i32, i32, i32, i32
  }
}

</mosaic_0001>

<llo_original>
// kernel: tpu_custom_call.1
$region0: #{tpu_custom_call.1}
  #allocation0 [shape = 'u32[]', space=smem, size = 0x4, offset = 0x4, fixed_abs, tag = 'smem constant byte address 0x4 - core index']
  #allocation1 [shape = 'u32[72,128]{1,0:T(1,128)}', space=vmem, size = 0x9000, scoped, tag = 'internal scratch']
  %s0 = inlined_call_operand.vmem [shape: f32[2,2,2,512], index: 0, kind: input, shape index: {}]
  %s1 = inlined_call_operand.vmem [shape: f32[2,9,4,2], index: 1, kind: input, shape index: {}]
  %s2 = inlined_call_operand.vmem [shape: f32[2,4,1], index: 2, kind: input, shape index: {}]
  %s3 = inlined_call_operand.hbm [shape: f32[2,2,4,384], index: 3, kind: output, shape index: {}]
  %s4 = sld [smem:[#allocation0]]
  $region45: #{tpu_custom_call.1} parent=0
    _
  %s6 = ssub.s32 1, %s4
  %s7 = scalar_select 0, %s6, %s4
  $region1: #{tpu_custom_call.1} parent=0
    #allocation2 [shape = 'u8[12288]{0}', space=vmem, size = 0x3000, scoped, tag = 'output window, operand 0']
    #allocation3 [shape = 's32[2]{0}', space=sflag, size = 0x8, scoped, tag = 'scoped memory for tpu_custom_call.1']
    %8 = vsyncpa [#allocation3], 0
    %s9 = scalar_lea.sflag [#allocation3], 1
    %10 = vsyncpa %s9, 0
    loop: start=0, step=1, limit=6
    $region2: #{tpu_custom_call.1} parent=1 // loop_pre_header
      _
    $region3: #{tpu_custom_call.1} parent=1 // loop_header
      %s12 = sphi 0, %s16
      %p13 = scmp.ge.s32.totalorder %s12, 6
      %s19 = sphi 0, %s31
      %s20 = sphi 0, %s27
      %s21 = sphi 0, %s19
      %s22 = sphi 0, %s20
      %s23 = sphi 0, %s21
      %s24 = sphi 0, %s22
      %s36 = sphi 0, %s38
      %s39 = sphi 0, %s36
      %s40 = sphi 0, %s39
      %s56 = sphi 0, %s40
      %s62 = sphi 0, %s64
      %s65 = sphi 0, %s62
      %s66 = sphi 0, %s65
      %s82 = sphi 0, %s66
      %s88 = sphi 0, %s90
      %s91 = sphi 0, %s88
      %s92 = sphi 0, %s91
      %s108 = sphi 0, %s92
      %s116 = sphi 0, %s118
      %s119 = sphi 0, %s116
      %s120 = sphi 0, %s119
      %s136 = sphi 0, %s120
    $region4: #{tpu_custom_call.1} parent=1 // loop_header_branch
      %15 = sbr.rel (%p13) target = $region8
    $region5: #{tpu_custom_call.1} parent=1 // loop_body
      %s17 = ssub.s32 %s12, 1
      %s18 = ssub.s32 %s12, 2
      %s25 = sadd.s32 1, %s20
      %p26 = scmp.ge.s32.totalorder %s25, 2
      %s27 = scalar_select %p26, 0, %s25
      %s28 = sadd.s32 1, %s19
      %s29 = scalar_select %p26, %s28, %s19
      %p30 = scmp.ge.s32.totalorder %s29, 2
      %s31 = scalar_select %p30, 0, %s29
      %s32 = ssub.s32 %s20, %s27
      %s33 = ssub.s32 %s19, %s31
      %s34 = sor.u32 %s32, %s33
      %p35 = scmp.eq.s32.totalorder %s34, 0
      %s37 = sadd.s32 %s36, 1
      %s38 = scalar_select %p35, %s36, %s37
      %p41 = pneg %p35
      %p42 = scmp.eq.s32.totalorder %s12, 3
      %p43 = por %p41, %p42
      %p44 = scmp.ne.s32.totalorder %s36, %s39
      %p45 = scmp.eq.s32.totalorder %s12, 0
      %p46 = por %p44, %p45
      %p47 = scmp.ne.s32.totalorder %s36, %s39
      %p48 = scmp.eq.s32.totalorder %s17, 3
      %p49 = por %p47, %p48
      %p50 = scmp.ne.s32.totalorder %s39, %s40
      %p51 = scmp.eq.s32.totalorder %s17, 0
      %p52 = por %p50, %p51
      %p53 = scmp.ne.s32.totalorder %s39, %s40
      %p54 = scmp.eq.s32.totalorder %s18, 3
      %p55 = por %p53, %p54
      %p57 = scmp.ne.s32.totalorder %s40, %s56
      %p58 = scmp.eq.s32.totalorder %s18, 0
      %p59 = por %p57, %p58
      %s60 = ssub.s32 %s19, %s31
      %p61 = scmp.eq.s32.totalorder %s60, 0
      %s63 = sadd.s32 %s62, 1
      %s64 = scalar_select %p61, %s62, %s63
      %p67 = pneg %p61
      %p68 = scmp.eq.s32.totalorder %s12, 3
      %p69 = por %p67, %p68
      %p70 = scmp.ne.s32.totalorder %s62, %s65
      %p71 = scmp.eq.s32.totalorder %s12, 0
      %p72 = por %p70, %p71
      %p73 = scmp.ne.s32.totalorder %s62, %s65
      %p74 = scmp.eq.s32.totalorder %s17, 3
      %p75 = por %p73, %p74
      %p76 = scmp.ne.s32.totalorder %s65, %s66
      %p77 = scmp.eq.s32.totalorder %s17, 0
      %p78 = por %p76, %p77
      %p79 = scmp.ne.s32.totalorder %s65, %s66
      %p80 = scmp.eq.s32.totalorder %s18, 3
      %p81 = por %p79, %p80
      %p83 = scmp.ne.s32.totalorder %s66, %s82
      %p84 = scmp.eq.s32.totalorder %s18, 0
      %p85 = por %p83, %p84
      %s86 = ssub.s32 %s19, %s31
      %p87 = scmp.eq.s32.totalorder %s86, 0
      %s89 = sadd.s32 %s88, 1
      %s90 = scalar_select %p87, %s88, %s89
      %p93 = pneg %p87
      %p94 = scmp.eq.s32.totalorder %s12, 3
      %p95 = por %p93, %p94
      %p96 = scmp.ne.s32.totalorder %s88, %s91
      %p97 = scmp.eq.s32.totalorder %s12, 0
      %p98 = por %p96, %p97
      %p99 = scmp.ne.s32.totalorder %s88, %s91
      %p100 = scmp.eq.s32.totalorder %s17, 3
      %p101 = por %p99, %p100
      %p102 = scmp.ne.s32.totalorder %s91, %s92
      %p103 = scmp.eq.s32.totalorder %s17, 0
      %p104 = por %p102, %p103
      %p105 = scmp.ne.s32.totalorder %s91, %s92
      %p106 = scmp.eq.s32.totalorder %s18, 3
      %p107 = por %p105, %p106
      %p109 = scmp.ne.s32.totalorder %s92, %s108
      %p110 = scmp.eq.s32.totalorder %s18, 0
      %p111 = por %p109, %p110
      %s112 = ssub.s32 %s20, %s27
      %s113 = ssub.s32 %s19, %s31
      %s114 = sor.u32 %s112, %s113
      %p115 = scmp.eq.s32.totalorder %s114, 0
      %s117 = sadd.s32 %s116, 1
      %s118 = scalar_select %p115, %s116, %s117
      %p121 = pneg %p115
      %p122 = scmp.eq.s32.totalorder %s12, 3
      %p123 = por %p121, %p122
      %p124 = scmp.ne.s32.totalorder %s116, %s119
      %p125 = scmp.eq.s32.totalorder %s12, 0
      %p126 = por %p124, %p125
      %p127 = scmp.ne.s32.totalorder %s116, %s119
      %p128 = scmp.eq.s32.totalorder %s17, 3
      %p129 = por %p127, %p128
      %p130 = scmp.ne.s32.totalorder %s119, %s120
      %p131 = scmp.eq.s32.totalorder %s17, 0
      %p132 = por %p130, %p131
      %p133 = scmp.ne.s32.totalorder %s119, %s120
      %p134 = scmp.eq.s32.totalorder %s18, 3
      %p135 = por %p133, %p134
      %p137 = scmp.ne.s32.totalorder %s120, %s136
      %p138 = scmp.eq.s32.totalorder %s18, 0
      %p139 = por %p137, %p138
      %p140 = scmp.le.s32.totalorder 1, %s12
      %p141 = scmp.lt.s32.totalorder %s12, 5
      %p142 = pnand %p140, %p141
      %p143 = pneg %p142
      // Predicated region
      $region9: #{tpu_custom_call.1} parent=5 // pred_check
        _
      $region10: #{tpu_custom_call.1} parent=5 // pred_check_branch
        %145 = sbr.rel (%p142) target = $region12
      $region11: #{tpu_custom_call.1} parent=5 // pred_region
        %s146 = ssub.s32 %s12, 1
      $region12: #{tpu_custom_call.1} parent=5 // pred_fallthru
        _
      %p147 = scmp.lt.s32.totalorder %s12, 4
      // Predicated region
      $region13: #{tpu_custom_call.1} parent=5 // pred_check
        %p148 = pneg %p147
      $region14: #{tpu_custom_call.1} parent=5 // pred_check_branch
        %150 = sbr.rel (%p148) target = $region16
      $region15: #{tpu_custom_call.1} parent=5 // pred_region
        // Predicated region
        $region17: #{tpu_custom_call.1} parent=15 // pred_check
          %p151 = pneg %p46
        $region18: #{tpu_custom_call.1} parent=15 // pred_check_branch
          %153 = sbr.rel (%p151) target = $region20
        $region19: #{tpu_custom_call.1} parent=15 // pred_region
          %p154 = scmp.lt.s32.totalorder %s20, 1
          %s155 = scalar_select %p154, %s20, 1
          %p156 = scmp.lt.s32.totalorder %s19, 1
          %s157 = scalar_select %p156, %s19, 1
          %s158 = smul.addr %s157, 4
          %s159 = smul.addr %s155, 8
          %s160 = sadd.s32 %s158, %s159
          %s161 = smul.addr %s160, 2
          %s162 = scalar_lea.vmem %s0, %s161
        $region20: #{tpu_custom_call.1} parent=15 // pred_fallthru
          _
        // Predicated region
        $region21: #{tpu_custom_call.1} parent=15 // pred_check
          %p163 = pneg %p72
        $region22: #{tpu_custom_call.1} parent=15 // pred_check_branch
          %165 = sbr.rel (%p163) target = $region24
        $region23: #{tpu_custom_call.1} parent=15 // pred_region
          %p166 = scmp.lt.s32.totalorder %s19, 1
          %s167 = scalar_select %p166, %s19, 1
          %s168 = smul.addr %s167, 9
          %s169 = smul.addr %s168, 4
          %s170 = scalar_lea.vmem %s1, %s169
        $region24: #{tpu_custom_call.1} parent=15 // pred_fallthru
          _
        // Predicated region
        $region25: #{tpu_custom_call.1} parent=15 // pred_check
          %p171 = pneg %p98
        $region26: #{tpu_custom_call.1} parent=15 // pred_check_branch
          %173 = sbr.rel (%p171) target = $region28
        $region27: #{tpu_custom_call.1} parent=15 // pred_region
          %p174 = scmp.lt.s32.totalorder %s19, 1
          %s175 = scalar_select %p174, %s19, 1
          %s176 = smul.addr %s175, 4
          %s177 = scalar_lea.vmem %s2, %s176
        $region28: #{tpu_custom_call.1} parent=15 // pred_fallthru
          _
      $region16: #{tpu_custom_call.1} parent=5 // pred_fallthru
        _
      %p178 = scmp.le.s32.totalorder 1, %s12
      %p179 = scmp.lt.s32.totalorder %s12, 5
      %p180 = pnand %p178, %p179
      %p181 = pneg %p180
      // Predicated region
      $region29: #{tpu_custom_call.1} parent=5 // pred_check
        _
      $region30: #{tpu_custom_call.1} parent=5 // pred_check_branch
        %183 = sbr.rel (%p180) target = $region32
      $region31: #{tpu_custom_call.1} parent=5 // pred_region
        %s184 = ssub.s32 %s12, 1
        %p185 = scmp.lt.s32.totalorder %s22, 1
        %s186 = scalar_select %p185, %s22, 1
        %p187 = scmp.lt.s32.totalorder %s21, 1
        %s188 = scalar_select %p187, %s21, 1
        %s189 = smul.addr %s188, 4
        %s190 = smul.addr %s186, 8
        %s191 = sadd.s32 %s189, %s190
        %s192 = smul.addr %s191, 2
        %s193 = scalar_lea.vmem %s0, %s192
        %p194 = pneg %p52
        %p195 = pneg %p49
        %p196 = scmp.lt.s32.totalorder %s21, 1
        %s197 = scalar_select %p196, %s21, 1
        %s198 = smul.addr %s197, 9
        %s199 = smul.addr %s198, 4
        %s200 = scalar_lea.vmem %s1, %s199
        %p201 = pneg %p78
        %p202 = pneg %p75
        %p203 = scmp.lt.s32.totalorder %s21, 1
        %s204 = scalar_select %p203, %s21, 1
        %s205 = smul.addr %s204, 4
        %s206 = scalar_lea.vmem %s2, %s205
        %p207 = pneg %p104
        %p208 = pneg %p101
        %p209 = pneg %p132
        %p210 = pneg %p129
        %s211 = sand.u32 %s119, 1
        %s212 = scalar_lea.sflag [#allocation3], %s211
        %s213 = sand.u32 %s119, 1
        %s214 = smul.addr %s213, 12
        %s215 = scalar_lea.vmem [#allocation2], %s214
        %p216 = scmp.lt.s32.totalorder %s22, 1
        %s217 = scalar_select %p216, %s22, 1
        %p218 = scmp.lt.s32.totalorder %s21, 1
        %s219 = scalar_select %p218, %s21, 1
        %s220 = smul.addr %s219, 4
        %s221 = smul.addr %s217, 8
        %s222 = sadd.s32 %s220, %s221
        %s223 = smul.addr %s222, 2
        %s224 = scalar_lea.vmem %s0, %s223
        %p225 = scmp.lt.s32.totalorder %s21, 1
        %s226 = scalar_select %p225, %s21, 1
        %s227 = smul.addr %s226, 9
        %s228 = smul.addr %s227, 4
        %s229 = scalar_lea.vmem %s1, %s228
        %p230 = scmp.lt.s32.totalorder %s21, 1
        %s231 = scalar_select %p230, %s21, 1
        %s232 = smul.addr %s231, 4
        %s233 = scalar_lea.vmem %s2, %s232
        %v234 = vld [vmem:[%s224] sm:$0x3f]
        %v235 = vld [vmem:[%s229] sm:$0xf]
        %v236 = vld [vmem:[%s224] sm:$0xff]
        %s237 = scalar_lea.vmem %s229, 4
        %v238 = vld [vmem:[%s237] sm:$0xf]
        %240 = vst [vmem:[#allocation1] ss:$4 sm:$0xff] %v236
        %v241 = vld.sshfl [vmem:[#allocation1] sm:$0xff pattern:$0x73625140]
        %v242 = vld.sshfl [vmem:[#allocation1 + $0x8] sm:$0xff pattern:$0x73625140]
        %v243 = vld.sshfl [vmem:[#allocation1 + $0x10] sm:$0xff pattern:$0x73625140]
        %v244 = vld.sshfl [vmem:[#allocation1 + $0x18] sm:$0xff pattern:$0x73625140]
        %245 = vrot.lane.b32.xlu0 %v241, 127
        %v246 = vpop.permute.xlu0 %245
        %247 = vrot.lane.b32.xlu0 %v242, 127
        %v248 = vpop.permute.xlu0 %247
        %249 = vrot.lane.b32.xlu0 %v243, 127
        %v250 = vpop.permute.xlu0 %249
        %251 = vrot.lane.b32.xlu0 %v244, 127
        %v252 = vpop.permute.xlu0 %251
        %vm253 = vcmask 1039360
        %v254 = vsel %vm253, %v246, %v248
        %v255 = vsel %vm253, %v248, %v250
        %v256 = vsel %vm253, %v250, %v252
        %vm257 = vcmask 15360
        %v259 = vsel %vm257, %v238, 0
        %vm261 = vcmask 1041408
        %v262 = vsel %vm261, %v254, 0
        %v264 = vsel %vm261, %v255, 0
        %v266 = vsel %vm261, %v256, 0
        %268 = vmatpush.msra.mxu0 0.0
        %269 = vmatpush.msra.mxu0 0.0
        %270 = vmatpush.msra.mxu0 0.0
        %271 = vmatpush.msra.mxu0 0.0
        %272 = vmatpush.msra.mxu0 0.0
        %273 = vmatpush.msra.mxu0 0.0
        %274 = vmatpush.msra.mxu0 0.0
        %275 = vmatpush.msra.mxu0 0.0
        %276 = vmatpush.msra.mxu0 0.0
        %277 = vmatpush.msra.mxu0 0.0
        %278 = vmatpush.msra.mxu0 0.0
        %279 = vmatpush.msra.mxu0 0.0
        %280 = vmatpush.msra.mxu0 0.0
        %281 = vmatpush.msra.mxu0 0.0
        %282 = vmatpush.msra.mxu0 0.0
        %283 = vmatpush.msra.mxu0 %v262
        %284 = vmatmul.f32.gmra.mxu0 %v259
        %v285 = vpop.f32.mrf.mxu0
        %v286 = vadd.f32 0.0, %v285
        %287 = vdwg.mxu0
        %288 = vmatpush.msra.mxu0 0.0
        %289 = vmatpush.msra.mxu0 0.0
        %290 = vmatpush.msra.mxu0 0.0
        %291 = vmatpush.msra.mxu0 0.0
        %292 = vmatpush.msra.mxu0 0.0
        %293 = vmatpush.msra.mxu0 0.0
        %294 = vmatpush.msra.mxu0 0.0
        %295 = vmatpush.msra.mxu0 0.0
        %296 = vmatpush.msra.mxu0 0.0
        %297 = vmatpush.msra.mxu0 0.0
        %298 = vmatpush.msra.mxu0 0.0
        %299 = vmatpush.msra.mxu0 0.0
        %300 = vmatpush.msra.mxu0 0.0
        %301 = vmatpush.msra.mxu0 0.0
        %302 = vmatpush.msra.mxu0 0.0
        %303 = vmatpush.msra.mxu0 %v264
        %304 = vmatmul.f32.gmra.mxu0 %v259
        %v305 = vpop.f32.mrf.mxu0
        %v306 = vadd.f32 0.0, %v305
        %307 = vdwg.mxu0
        %308 = vmatpush.msra.mxu0 0.0
        %309 = vmatpush.msra.mxu0 0.0
        %310 = vmatpush.msra.mxu0 0.0
        %311 = vmatpush.msra.mxu0 0.0
        %312 = vmatpush.msra.mxu0 0.0
        %313 = vmatpush.msra.mxu0 0.0
        %314 = vmatpush.msra.mxu0 0.0
        %315 = vmatpush.msra.mxu0 0.0
        %316 = vmatpush.msra.mxu0 0.0
        %317 = vmatpush.msra.mxu0 0.0
        %318 = vmatpush.msra.mxu0 0.0
        %319 = vmatpush.msra.mxu0 0.0
        %320 = vmatpush.msra.mxu0 0.0
        %321 = vmatpush.msra.mxu0 0.0
        %322 = vmatpush.msra.mxu0 0.0
        %323 = vmatpush.msra.mxu0 %v266
        %324 = vmatmul.f32.gmra.mxu0 %v259
        %v325 = vpop.f32.mrf.mxu0
        %v326 = vadd.f32 0.0, %v325
        %327 = vdwg.mxu0
        %329 = vst [vmem:[#allocation1] ss:$4 sm:$0xff] %v234
        %v330 = vld.sshfl [vmem:[#allocation1] sm:$0xff pattern:$0x73625140]
        %v331 = vld.sshfl [vmem:[#allocation1 + $0x8] sm:$0xff pattern:$0x73625140]
        %v332 = vld.sshfl [vmem:[#allocation1 + $0x10] sm:$0xff pattern:$0x73625140]
        %v334 = vsel %vm257, %v235, 0
        %v336 = vsel %vm261, %v330, 0
        %v338 = vsel %vm261, %v331, 0
        %v340 = vsel %vm261, %v332, 0
        %342 = vmatpush.msra.mxu0 0.0
        %343 = vmatpush.msra.mxu0 0.0
        %344 = vmatpush.msra.mxu0 0.0
        %345 = vmatpush.msra.mxu0 0.0
        %346 = vmatpush.msra.mxu0 0.0
        %347 = vmatpush.msra.mxu0 0.0
        %348 = vmatpush.msra.mxu0 0.0
        %349 = vmatpush.msra.mxu0 0.0
        %350 = vmatpush.msra.mxu0 0.0
        %351 = vmatpush.msra.mxu0 0.0
        %352 = vmatpush.msra.mxu0 0.0
        %353 = vmatpush.msra.mxu0 0.0
        %354 = vmatpush.msra.mxu0 0.0
        %355 = vmatpush.msra.mxu0 0.0
        %356 = vmatpush.msra.mxu0 0.0
        %357 = vmatpush.msra.mxu0 %v336
        %358 = vmatmul.f32.gmra.mxu0 %v334
        %v359 = vpop.f32.mrf.mxu0
        %v360 = vadd.f32 %v286, %v359
        %361 = vdwg.mxu0
        %362 = vmatpush.msra.mxu0 0.0
        %363 = vmatpush.msra.mxu0 0.0
        %364 = vmatpush.msra.mxu0 0.0
        %365 = vmatpush.msra.mxu0 0.0
        %366 = vmatpush.msra.mxu0 0.0
        %367 = vmatpush.msra.mxu0 0.0
        %368 = vmatpush.msra.mxu0 0.0
        %369 = vmatpush.msra.mxu0 0.0
        %370 = vmatpush.msra.mxu0 0.0
        %371 = vmatpush.msra.mxu0 0.0
        %372 = vmatpush.msra.mxu0 0.0
        %373 = vmatpush.msra.mxu0 0.0
        %374 = vmatpush.msra.mxu0 0.0
        %375 = vmatpush.msra.mxu0 0.0
        %376 = vmatpush.msra.mxu0 0.0
        %377 = vmatpush.msra.mxu0 %v338
        %378 = vmatmul.f32.gmra.mxu0 %v334
        %v379 = vpop.f32.mrf.mxu0
        %v380 = vadd.f32 %v306, %v379
        %381 = vdwg.mxu0
        %382 = vmatpush.msra.mxu0 0.0
        %383 = vmatpush.msra.mxu0 0.0
        %384 = vmatpush.msra.mxu0 0.0
        %385 = vmatpush.msra.mxu0 0.0
        %386 = vmatpush.msra.mxu0 0.0
        %387 = vmatpush.msra.mxu0 0.0
        %388 = vmatpush.msra.mxu0 0.0
        %389 = vmatpush.msra.mxu0 0.0
        %390 = vmatpush.msra.mxu0 0.0
        %391 = vmatpush.msra.mxu0 0.0
        %392 = vmatpush.msra.mxu0 0.0
        %393 = vmatpush.msra.mxu0 0.0
        %394 = vmatpush.msra.mxu0 0.0
        %395 = vmatpush.msra.mxu0 0.0
        %396 = vmatpush.msra.mxu0 0.0
        %397 = vmatpush.msra.mxu0 %v340
        %398 = vmatmul.f32.gmra.mxu0 %v334
        %v399 = vpop.f32.mrf.mxu0
        %v400 = vadd.f32 %v326, %v399
        %401 = vdwg.mxu0
        %v402 = vld [vmem:[%s224] sm:$0xff]
        %s403 = scalar_lea.vmem %s229, 8
        %v404 = vld [vmem:[%s403] sm:$0xf]
        %406 = vst [vmem:[#allocation1] ss:$4 sm:$0xff] %v402
        %v407 = vld.sshfl [vmem:[#allocation1] sm:$0xff pattern:$0x73625140]
        %v408 = vld.sshfl [vmem:[#allocation1 + $0x8] sm:$0xff pattern:$0x73625140]
        %v409 = vld.sshfl [vmem:[#allocation1 + $0x10] sm:$0xff pattern:$0x73625140]
        %v410 = vld.sshfl [vmem:[#allocation1 + $0x18] sm:$0xff pattern:$0x73625140]
        %411 = vrot.lane.b32.xlu0 %v407, 126
        %v412 = vpop.permute.xlu0 %411
        %413 = vrot.lane.b32.xlu0 %v408, 126
        %v414 = vpop.permute.xlu0 %413
        %415 = vrot.lane.b32.xlu0 %v409, 126
        %v416 = vpop.permute.xlu0 %415
        %417 = vrot.lane.b32.xlu0 %v410, 126
        %v418 = vpop.permute.xlu0 %417
        %vm419 = vcmask 1031168
        %v420 = vsel %vm419, %v412, %v414
        %v421 = vsel %vm419, %v414, %v416
        %v422 = vsel %vm419, %v416, %v418
        %v424 = vsel %vm257, %v404, 0
        %v426 = vsel %vm261, %v420, 0
        %v428 = vsel %vm261, %v421, 0
        %v430 = vsel %vm261, %v422, 0
        %432 = vmatpush.msra.mxu0 0.0
        %433 = vmatpush.msra.mxu0 0.0
        %434 = vmatpush.msra.mxu0 0.0
        %435 = vmatpush.msra.mxu0 0.0
        %436 = vmatpush.msra.mxu0 0.0
        %437 = vmatpush.msra.mxu0 0.0
        %438 = vmatpush.msra.mxu0 0.0
        %439 = vmatpush.msra.mxu0 0.0
        %440 = vmatpush.msra.mxu0 0.0
        %441 = vmatpush.msra.mxu0 0.0
        %442 = vmatpush.msra.mxu0 0.0
        %443 = vmatpush.msra.mxu0 0.0
        %444 = vmatpush.msra.mxu0 0.0
        %445 = vmatpush.msra.mxu0 0.0
        %446 = vmatpush.msra.mxu0 0.0
        %447 = vmatpush.msra.mxu0 %v426
        %448 = vmatmul.f32.gmra.mxu0 %v424
        %v449 = vpop.f32.mrf.mxu0
        %v450 = vadd.f32 0.0, %v449
        %451 = vdwg.mxu0
        %452 = vmatpush.msra.mxu0 0.0
        %453 = vmatpush.msra.mxu0 0.0
        %454 = vmatpush.msra.mxu0 0.0
        %455 = vmatpush.msra.mxu0 0.0
        %456 = vmatpush.msra.mxu0 0.0
        %457 = vmatpush.msra.mxu0 0.0
        %458 = vmatpush.msra.mxu0 0.0
        %459 = vmatpush.msra.mxu0 0.0
        %460 = vmatpush.msra.mxu0 0.0
        %461 = vmatpush.msra.mxu0 0.0
        %462 = vmatpush.msra.mxu0 0.0
        %463 = vmatpush.msra.mxu0 0.0
        %464 = vmatpush.msra.mxu0 0.0
        %465 = vmatpush.msra.mxu0 0.0
        %466 = vmatpush.msra.mxu0 0.0
        %467 = vmatpush.msra.mxu0 %v428
        %468 = vmatmul.f32.gmra.mxu0 %v424
        %v469 = vpop.f32.mrf.mxu0
        %v470 = vadd.f32 0.0, %v469
        %471 = vdwg.mxu0
        %472 = vmatpush.msra.mxu0 0.0
        %473 = vmatpush.msra.mxu0 0.0
        %474 = vmatpush.msra.mxu0 0.0
        %475 = vmatpush.msra.mxu0 0.0
        %476 = vmatpush.msra.mxu0 0.0
        %477 = vmatpush.msra.mxu0 0.0
        %478 = vmatpush.msra.mxu0 0.0
        %479 = vmatpush.msra.mxu0 0.0
        %480 = vmatpush.msra.mxu0 0.0
        %481 = vmatpush.msra.mxu0 0.0
        %482 = vmatpush.msra.mxu0 0.0
        %483 = vmatpush.msra.mxu0 0.0
        %484 = vmatpush.msra.mxu0 0.0
        %485 = vmatpush.msra.mxu0 0.0
        %486 = vmatpush.msra.mxu0 0.0
        %487 = vmatpush.msra.mxu0 %v430
        %488 = vmatmul.f32.gmra.mxu0 %v424
        %v489 = vpop.f32.mrf.mxu0
        %v490 = vadd.f32 0.0, %v489
        %491 = vdwg.mxu0
        %v492 = vadd.f32 %v360, %v450
        %v493 = vadd.f32 %v380, %v470
        %v494 = vadd.f32 %v400, %v490
        %v495 = vld [vmem:[%s224] sm:$0xff]
        %s496 = scalar_lea.vmem %s229, 12
        %v497 = vld [vmem:[%s496] sm:$0xf]
        %499 = vst [vmem:[#allocation1] ss:$4 sm:$0xff] %v495
        %v500 = vld.sshfl [vmem:[#allocation1] sm:$0xff pattern:$0x73625140]
        %v501 = vld.sshfl [vmem:[#allocation1 + $0x8] sm:$0xff pattern:$0x73625140]
        %v502 = vld.sshfl [vmem:[#allocation1 + $0x10] sm:$0xff pattern:$0x73625140]
        %v503 = vld.sshfl [vmem:[#allocation1 + $0x18] sm:$0xff pattern:$0x73625140]
        %504 = vrot.lane.b32.xlu0 %v500, 110
        %v505 = vpop.permute.xlu0 %504
        %506 = vrot.lane.b32.xlu0 %v501, 110
        %v507 = vpop.permute.xlu0 %506
        %508 = vrot.lane.b32.xlu0 %v502, 110
        %v509 = vpop.permute.xlu0 %508
        %510 = vrot.lane.b32.xlu0 %v503, 110
        %v511 = vpop.permute.xlu0 %510
        %vm512 = vcmask 900096
        %v513 = vsel %vm512, %v505, %v507
        %v514 = vsel %vm512, %v507, %v509
        %v515 = vsel %vm512, %v509, %v511
        %v517 = vsel %vm257, %v497, 0
        %v519 = vsel %vm261, %v513, 0
        %v521 = vsel %vm261, %v514, 0
        %v523 = vsel %vm261, %v515, 0
        %525 = vmatpush.msra.mxu0 0.0
        %526 = vmatpush.msra.mxu0 0.0
        %527 = vmatpush.msra.mxu0 0.0
        %528 = vmatpush.msra.mxu0 0.0
        %529 = vmatpush.msra.mxu0 0.0
        %530 = vmatpush.msra.mxu0 0.0
        %531 = vmatpush.msra.mxu0 0.0
        %532 = vmatpush.msra.mxu0 0.0
        %533 = vmatpush.msra.mxu0 0.0
        %534 = vmatpush.msra.mxu0 0.0
        %535 = vmatpush.msra.mxu0 0.0
        %536 = vmatpush.msra.mxu0 0.0
        %537 = vmatpush.msra.mxu0 0.0
        %538 = vmatpush.msra.mxu0 0.0
        %539 = vmatpush.msra.mxu0 0.0
        %540 = vmatpush.msra.mxu0 %v519
        %541 = vmatmul.f32.gmra.mxu0 %v517
        %v542 = vpop.f32.mrf.mxu0
        %v543 = vadd.f32 0.0, %v542
        %544 = vdwg.mxu0
        %545 = vmatpush.msra.mxu0 0.0
        %546 = vmatpush.msra.mxu0 0.0
        %547 = vmatpush.msra.mxu0 0.0
        %548 = vmatpush.msra.mxu0 0.0
        %549 = vmatpush.msra.mxu0 0.0
        %550 = vmatpush.msra.mxu0 0.0
        %551 = vmatpush.msra.mxu0 0.0
        %552 = vmatpush.msra.mxu0 0.0
        %553 = vmatpush.msra.mxu0 0.0
        %554 = vmatpush.msra.mxu0 0.0
        %555 = vmatpush.msra.mxu0 0.0
        %556 = vmatpush.msra.mxu0 0.0
        %557 = vmatpush.msra.mxu0 0.0
        %558 = vmatpush.msra.mxu0 0.0
        %559 = vmatpush.msra.mxu0 0.0
        %560 = vmatpush.msra.mxu0 %v521
        %561 = vmatmul.f32.gmra.mxu0 %v517
        %v562 = vpop.f32.mrf.mxu0
        %v563 = vadd.f32 0.0, %v562
        %564 = vdwg.mxu0
        %565 = vmatpush.msra.mxu0 0.0
        %566 = vmatpush.msra.mxu0 0.0
        %567 = vmatpush.msra.mxu0 0.0
        %568 = vmatpush.msra.mxu0 0.0
        %569 = vmatpush.msra.mxu0 0.0
        %570 = vmatpush.msra.mxu0 0.0
        %571 = vmatpush.msra.mxu0 0.0
        %572 = vmatpush.msra.mxu0 0.0
        %573 = vmatpush.msra.mxu0 0.0
        %574 = vmatpush.msra.mxu0 0.0
        %575 = vmatpush.msra.mxu0 0.0
        %576 = vmatpush.msra.mxu0 0.0
        %577 = vmatpush.msra.mxu0 0.0
        %578 = vmatpush.msra.mxu0 0.0
        %579 = vmatpush.msra.mxu0 0.0
        %580 = vmatpush.msra.mxu0 %v523
        %581 = vmatmul.f32.gmra.mxu0 %v517
        %v582 = vpop.f32.mrf.mxu0
        %v583 = vadd.f32 0.0, %v582
        %584 = vdwg.mxu0
        %v585 = vadd.f32 %v492, %v543
        %v586 = vadd.f32 %v493, %v563
        %v587 = vadd.f32 %v494, %v583
        %v588 = vld [vmem:[%s224] sm:$0xff]
        %s589 = scalar_lea.vmem %s229, 16
        %v590 = vld [vmem:[%s589] sm:$0xf]
        %592 = vst [vmem:[#allocation1] ss:$4 sm:$0xff] %v588
        %v593 = vld.sshfl [vmem:[#allocation1] sm:$0xff pattern:$0x73625140]
        %v594 = vld.sshfl [vmem:[#allocation1 + $0x8] sm:$0xff pattern:$0x73625140]
        %v595 = vld.sshfl [vmem:[#allocation1 + $0x10] sm:$0xff pattern:$0x73625140]
        %v596 = vld.sshfl [vmem:[#allocation1 + $0x18] sm:$0xff pattern:$0x73625140]
        %597 = vrot.lane.b32.xlu0 %v593, 109
        %v598 = vpop.permute.xlu0 %597
        %599 = vrot.lane.b32.xlu0 %v594, 109
        %v600 = vpop.permute.xlu0 %599
        %601 = vrot.lane.b32.xlu0 %v595, 109
        %v602 = vpop.permute.xlu0 %601
        %603 = vrot.lane.b32.xlu0 %v596, 109
        %v604 = vpop.permute.xlu0 %603
        %vm605 = vcmask 891904
        %v606 = vsel %vm605, %v598, %v600
        %v607 = vsel %vm605, %v600, %v602
        %v608 = vsel %vm605, %v602, %v604
        %v610 = vsel %vm257, %v590, 0
        %v612 = vsel %vm261, %v606, 0
        %v614 = vsel %vm261, %v607, 0
        %v616 = vsel %vm261, %v608, 0
        %618 = vmatpush.msra.mxu0 0.0
        %619 = vmatpush.msra.mxu0 0.0
        %620 = vmatpush.msra.mxu0 0.0
        %621 = vmatpush.msra.mxu0 0.0
        %622 = vmatpush.msra.mxu0 0.0
        %623 = vmatpush.msra.mxu0 0.0
        %624 = vmatpush.msra.mxu0 0.0
        %625 = vmatpush.msra.mxu0 0.0
        %626 = vmatpush.msra.mxu0 0.0
        %627 = vmatpush.msra.mxu0 0.0
        %628 = vmatpush.msra.mxu0 0.0
        %629 = vmatpush.msra.mxu0 0.0
        %630 = vmatpush.msra.mxu0 0.0
        %631 = vmatpush.msra.mxu0 0.0
        %632 = vmatpush.msra.mxu0 0.0
        %633 = vmatpush.msra.mxu0 %v612
        %634 = vmatmul.f32.gmra.mxu0 %v610
        %v635 = vpop.f32.mrf.mxu0
        %v636 = vadd.f32 0.0, %v635
        %637 = vdwg.mxu0
        %638 = vmatpush.msra.mxu0 0.0
        %639 = vmatpush.msra.mxu0 0.0
        %640 = vmatpush.msra.mxu0 0.0
        %641 = vmatpush.msra.mxu0 0.0
        %642 = vmatpush.msra.mxu0 0.0
        %643 = vmatpush.msra.mxu0 0.0
        %644 = vmatpush.msra.mxu0 0.0
        %645 = vmatpush.msra.mxu0 0.0
        %646 = vmatpush.msra.mxu0 0.0
        %647 = vmatpush.msra.mxu0 0.0
        %648 = vmatpush.msra.mxu0 0.0
        %649 = vmatpush.msra.mxu0 0.0
        %650 = vmatpush.msra.mxu0 0.0
        %651 = vmatpush.msra.mxu0 0.0
        %652 = vmatpush.msra.mxu0 0.0
        %653 = vmatpush.msra.mxu0 %v614
        %654 = vmatmul.f32.gmra.mxu0 %v610
        %v655 = vpop.f32.mrf.mxu0
        %v656 = vadd.f32 0.0, %v655
        %657 = vdwg.mxu0
        %658 = vmatpush.msra.mxu0 0.0
        %659 = vmatpush.msra.mxu0 0.0
        %660 = vmatpush.msra.mxu0 0.0
        %661 = vmatpush.msra.mxu0 0.0
        %662 = vmatpush.msra.mxu0 0.0
        %663 = vmatpush.msra.mxu0 0.0
        %664 = vmatpush.msra.mxu0 0.0
        %665 = vmatpush.msra.mxu0 0.0
        %666 = vmatpush.msra.mxu0 0.0
        %667 = vmatpush.msra.mxu0 0.0
        %668 = vmatpush.msra.mxu0 0.0
        %669 = vmatpush.msra.mxu0 0.0
        %670 = vmatpush.msra.mxu0 0.0
        %671 = vmatpush.msra.mxu0 0.0
        %672 = vmatpush.msra.mxu0 0.0
        %673 = vmatpush.msra.mxu0 %v616
        %674 = vmatmul.f32.gmra.mxu0 %v610
        %v675 = vpop.f32.mrf.mxu0
        %v676 = vadd.f32 0.0, %v675
        %677 = vdwg.mxu0
        %v678 = vadd.f32 %v585, %v636
        %v679 = vadd.f32 %v586, %v656
        %v680 = vadd.f32 %v587, %v676
        %v681 = vld [vmem:[%s224] sm:$0xff]
        %s682 = scalar_lea.vmem %s229, 20
        %v683 = vld [vmem:[%s682] sm:$0xf]
        %685 = vst [vmem:[#allocation1] ss:$4 sm:$0xff] %v681
        %v686 = vld.sshfl [vmem:[#allocation1] sm:$0xff pattern:$0x73625140]
        %v687 = vld.sshfl [vmem:[#allocation1 + $0x8] sm:$0xff pattern:$0x73625140]
        %v688 = vld.sshfl [vmem:[#allocation1 + $0x10] sm:$0xff pattern:$0x73625140]
        %v689 = vld.sshfl [vmem:[#allocation1 + $0x18] sm:$0xff pattern:$0x73625140]
        %690 = vrot.lane.b32.xlu0 %v686, 108
        %v691 = vpop.permute.xlu0 %690
        %692 = vrot.lane.b32.xlu0 %v687, 108
        %v693 = vpop.permute.xlu0 %692
        %694 = vrot.lane.b32.xlu0 %v688, 108
        %v695 = vpop.permute.xlu0 %694
        %696 = vrot.lane.b32.xlu0 %v689, 108
        %v697 = vpop.permute.xlu0 %696
        %vm698 = vcmask 883712
        %v699 = vsel %vm698, %v691, %v693
        %v700 = vsel %vm698, %v693, %v695
        %v701 = vsel %vm698, %v695, %v697
        %v703 = vsel %vm257, %v683, 0
        %v705 = vsel %vm261, %v699, 0
        %v707 = vsel %vm261, %v700, 0
        %v709 = vsel %vm261, %v701, 0
        %711 = vmatpush.msra.mxu0 0.0
        %712 = vmatpush.msra.mxu0 0.0
        %713 = vmatpush.msra.mxu0 0.0
        %714 = vmatpush.msra.mxu0 0.0
        %715 = vmatpush.msra.mxu0 0.0
        %716 = vmatpush.msra.mxu0 0.0
        %717 = vmatpush.msra.mxu0 0.0
        %718 = vmatpush.msra.mxu0 0.0
        %719 = vmatpush.msra.mxu0 0.0
        %720 = vmatpush.msra.mxu0 0.0
        %721 = vmatpush.msra.mxu0 0.0
        %722 = vmatpush.msra.mxu0 0.0
        %723 = vmatpush.msra.mxu0 0.0
        %724 = vmatpush.msra.mxu0 0.0
        %725 = vmatpush.msra.mxu0 0.0
        %726 = vmatpush.msra.mxu0 %v705
        %727 = vmatmul.f32.gmra.mxu0 %v703
        %v728 = vpop.f32.mrf.mxu0
        %v729 = vadd.f32 0.0, %v728
        %730 = vdwg.mxu0
        %731 = vmatpush.msra.mxu0 0.0
        %732 = vmatpush.msra.mxu0 0.0
        %733 = vmatpush.msra.mxu0 0.0
        %734 = vmatpush.msra.mxu0 0.0
        %735 = vmatpush.msra.mxu0 0.0
        %736 = vmatpush.msra.mxu0 0.0
        %737 = vmatpush.msra.mxu0 0.0
        %738 = vmatpush.msra.mxu0 0.0
        %739 = vmatpush.msra.mxu0 0.0
        %740 = vmatpush.msra.mxu0 0.0
        %741 = vmatpush.msra.mxu0 0.0
        %742 = vmatpush.msra.mxu0 0.0
        %743 = vmatpush.msra.mxu0 0.0
        %744 = vmatpush.msra.mxu0 0.0
        %745 = vmatpush.msra.mxu0 0.0
        %746 = vmatpush.msra.mxu0 %v707
        %747 = vmatmul.f32.gmra.mxu0 %v703
        %v748 = vpop.f32.mrf.mxu0
        %v749 = vadd.f32 0.0, %v748
        %750 = vdwg.mxu0
        %751 = vmatpush.msra.mxu0 0.0
        %752 = vmatpush.msra.mxu0 0.0
        %753 = vmatpush.msra.mxu0 0.0
        %754 = vmatpush.msra.mxu0 0.0
        %755 = vmatpush.msra.mxu0 0.0
        %756 = vmatpush.msra.mxu0 0.0
        %757 = vmatpush.msra.mxu0 0.0
        %758 = vmatpush.msra.mxu0 0.0
        %759 = vmatpush.msra.mxu0 0.0
        %760 = vmatpush.msra.mxu0 0.0
        %761 = vmatpush.msra.mxu0 0.0
        %762 = vmatpush.msra.mxu0 0.0
        %763 = vmatpush.msra.mxu0 0.0
        %764 = vmatpush.msra.mxu0 0.0
        %765 = vmatpush.msra.mxu0 0.0
        %766 = vmatpush.msra.mxu0 %v709
        %767 = vmatmul.f32.gmra.mxu0 %v703
        %v768 = vpop.f32.mrf.mxu0
        %v769 = vadd.f32 0.0, %v768
        %770 = vdwg.mxu0
        %v771 = vadd.f32 %v678, %v729
        %v772 = vadd.f32 %v679, %v749
        %v773 = vadd.f32 %v680, %v769
        %v774 = vld [vmem:[%s224] sm:$0xff]
        %s775 = scalar_lea.vmem %s229, 24
        %v776 = vld [vmem:[%s775] sm:$0xf]
        %778 = vst [vmem:[#allocation1] ss:$4 sm:$0xff] %v774
        %v779 = vld.sshfl [vmem:[#allocation1] sm:$0xff pattern:$0x73625140]
        %v780 = vld.sshfl [vmem:[#allocation1 + $0x8] sm:$0xff pattern:$0x73625140]
        %v781 = vld.sshfl [vmem:[#allocation1 + $0x10] sm:$0xff pattern:$0x73625140]
        %v782 = vld.sshfl [vmem:[#allocation1 + $0x18] sm:$0xff pattern:$0x73625140]
        %783 = vrot.lane.b32.xlu0 %v779, 92
        %v784 = vpop.permute.xlu0 %783
        %785 = vrot.lane.b32.xlu0 %v780, 92
        %v786 = vpop.permute.xlu0 %785
        %787 = vrot.lane.b32.xlu0 %v781, 92
        %v788 = vpop.permute.xlu0 %787
        %789 = vrot.lane.b32.xlu0 %v782, 92
        %v790 = vpop.permute.xlu0 %789
        %vm791 = vcmask 752640
        %v792 = vsel %vm791, %v784, %v786
        %v793 = vsel %vm791, %v786, %v788
        %v794 = vsel %vm791, %v788, %v790
        %v796 = vsel %vm257, %v776, 0
        %v798 = vsel %vm261, %v792, 0
        %v800 = vsel %vm261, %v793, 0
        %v802 = vsel %vm261, %v794, 0
        %804 = vmatpush.msra.mxu0 0.0
        %805 = vmatpush.msra.mxu0 0.0
        %806 = vmatpush.msra.mxu0 0.0
        %807 = vmatpush.msra.mxu0 0.0
        %808 = vmatpush.msra.mxu0 0.0
        %809 = vmatpush.msra.mxu0 0.0
        %810 = vmatpush.msra.mxu0 0.0
        %811 = vmatpush.msra.mxu0 0.0
        %812 = vmatpush.msra.mxu0 0.0
        %813 = vmatpush.msra.mxu0 0.0
        %814 = vmatpush.msra.mxu0 0.0
        %815 = vmatpush.msra.mxu0 0.0
        %816 = vmatpush.msra.mxu0 0.0
        %817 = vmatpush.msra.mxu0 0.0
        %818 = vmatpush.msra.mxu0 0.0
        %819 = vmatpush.msra.mxu0 %v798
        %820 = vmatmul.f32.gmra.mxu0 %v796
        %v821 = vpop.f32.mrf.mxu0
        %v822 = vadd.f32 0.0, %v821
        %823 = vdwg.mxu0
        %824 = vmatpush.msra.mxu0 0.0
        %825 = vmatpush.msra.mxu0 0.0
        %826 = vmatpush.msra.mxu0 0.0
        %827 = vmatpush.msra.mxu0 0.0
        %828 = vmatpush.msra.mxu0 0.0
        %829 = vmatpush.msra.mxu0 0.0
        %830 = vmatpush.msra.mxu0 0.0
        %831 = vmatpush.msra.mxu0 0.0
        %832 = vmatpush.msra.mxu0 0.0
        %833 = vmatpush.msra.mxu0 0.0
        %834 = vmatpush.msra.mxu0 0.0
        %835 = vmatpush.msra.mxu0 0.0
        %836 = vmatpush.msra.mxu0 0.0
        %837 = vmatpush.msra.mxu0 0.0
        %838 = vmatpush.msra.mxu0 0.0
        %839 = vmatpush.msra.mxu0 %v800
        %840 = vmatmul.f32.gmra.mxu0 %v796
        %v841 = vpop.f32.mrf.mxu0
        %v842 = vadd.f32 0.0, %v841
        %843 = vdwg.mxu0
        %844 = vmatpush.msra.mxu0 0.0
        %845 = vmatpush.msra.mxu0 0.0
        %846 = vmatpush.msra.mxu0 0.0
        %847 = vmatpush.msra.mxu0 0.0
        %848 = vmatpush.msra.mxu0 0.0
        %849 = vmatpush.msra.mxu0 0.0
        %850 = vmatpush.msra.mxu0 0.0
        %851 = vmatpush.msra.mxu0 0.0
        %852 = vmatpush.msra.mxu0 0.0
        %853 = vmatpush.msra.mxu0 0.0
        %854 = vmatpush.msra.mxu0 0.0
        %855 = vmatpush.msra.mxu0 0.0
        %856 = vmatpush.msra.mxu0 0.0
        %857 = vmatpush.msra.mxu0 0.0
        %858 = vmatpush.msra.mxu0 0.0
        %859 = vmatpush.msra.mxu0 %v802
        %860 = vmatmul.f32.gmra.mxu0 %v796
        %v861 = vpop.f32.mrf.mxu0
        %v862 = vadd.f32 0.0, %v861
        %863 = vdwg.mxu0
        %v864 = vadd.f32 %v771, %v822
        %v865 = vadd.f32 %v772, %v842
        %v866 = vadd.f32 %v773, %v862
        %v867 = vld [vmem:[%s224] sm:$0xff]
        %s868 = scalar_lea.vmem %s229, 28
        %v869 = vld [vmem:[%s868] sm:$0xf]
        %871 = vst [vmem:[#allocation1] ss:$4 sm:$0xff] %v867
        %v872 = vld.sshfl [vmem:[#allocation1] sm:$0xff pattern:$0x73625140]
        %v873 = vld.sshfl [vmem:[#allocation1 + $0x8] sm:$0xff pattern:$0x73625140]
        %v874 = vld.sshfl [vmem:[#allocation1 + $0x10] sm:$0xff pattern:$0x73625140]
        %v875 = vld.sshfl [vmem:[#allocation1 + $0x18] sm:$0xff pattern:$0x73625140]
        %876 = vrot.lane.b32.xlu0 %v872, 91
        %v877 = vpop.permute.xlu0 %876
        %878 = vrot.lane.b32.xlu0 %v873, 91
        %v879 = vpop.permute.xlu0 %878
        %880 = vrot.lane.b32.xlu0 %v874, 91
        %v881 = vpop.permute.xlu0 %880
        %882 = vrot.lane.b32.xlu0 %v875, 91
        %v883 = vpop.permute.xlu0 %882
        %vm884 = vcmask 744448
        %v885 = vsel %vm884, %v877, %v879
        %v886 = vsel %vm884, %v879, %v881
        %v887 = vsel %vm884, %v881, %v883
        %v889 = vsel %vm257, %v869, 0
        %v891 = vsel %vm261, %v885, 0
        %v893 = vsel %vm261, %v886, 0
        %v895 = vsel %vm261, %v887, 0
        %897 = vmatpush.msra.mxu0 0.0
        %898 = vmatpush.msra.mxu0 0.0
        %899 = vmatpush.msra.mxu0 0.0
        %900 = vmatpush.msra.mxu0 0.0
        %901 = vmatpush.msra.mxu0 0.0
        %902 = vmatpush.msra.mxu0 0.0
        %903 = vmatpush.msra.mxu0 0.0
        %904 = vmatpush.msra.mxu0 0.0
        %905 = vmatpush.msra.mxu0 0.0
        %906 = vmatpush.msra.mxu0 0.0
        %907 = vmatpush.msra.mxu0 0.0
        %908 = vmatpush.msra.mxu0 0.0
        %909 = vmatpush.msra.mxu0 0.0
        %910 = vmatpush.msra.mxu0 0.0
        %911 = vmatpush.msra.mxu0 0.0
        %912 = vmatpush.msra.mxu0 %v891
        %913 = vmatmul.f32.gmra.mxu0 %v889
        %v914 = vpop.f32.mrf.mxu0
        %v915 = vadd.f32 0.0, %v914
        %916 = vdwg.mxu0
        %917 = vmatpush.msra.mxu0 0.0
        %918 = vmatpush.msra.mxu0 0.0
        %919 = vmatpush.msra.mxu0 0.0
        %920 = vmatpush.msra.mxu0 0.0
        %921 = vmatpush.msra.mxu0 0.0
        %922 = vmatpush.msra.mxu0 0.0
        %923 = vmatpush.msra.mxu0 0.0
        %924 = vmatpush.msra.mxu0 0.0
        %925 = vmatpush.msra.mxu0 0.0
        %926 = vmatpush.msra.mxu0 0.0
        %927 = vmatpush.msra.mxu0 0.0
        %928 = vmatpush.msra.mxu0 0.0
        %929 = vmatpush.msra.mxu0 0.0
        %930 = vmatpush.msra.mxu0 0.0
        %931 = vmatpush.msra.mxu0 0.0
        %932 = vmatpush.msra.mxu0 %v893
        %933 = vmatmul.f32.gmra.mxu0 %v889
        %v934 = vpop.f32.mrf.mxu0
        %v935 = vadd.f32 0.0, %v934
        %936 = vdwg.mxu0
        %937 = vmatpush.msra.mxu0 0.0
        %938 = vmatpush.msra.mxu0 0.0
        %939 = vmatpush.msra.mxu0 0.0
        %940 = vmatpush.msra.mxu0 0.0
        %941 = vmatpush.msra.mxu0 0.0
        %942 = vmatpush.msra.mxu0 0.0
        %943 = vmatpush.msra.mxu0 0.0
        %944 = vmatpush.msra.mxu0 0.0
        %945 = vmatpush.msra.mxu0 0.0
        %946 = vmatpush.msra.mxu0 0.0
        %947 = vmatpush.msra.mxu0 0.0
        %948 = vmatpush.msra.mxu0 0.0
        %949 = vmatpush.msra.mxu0 0.0
        %950 = vmatpush.msra.mxu0 0.0
        %951 = vmatpush.msra.mxu0 0.0
        %952 = vmatpush.msra.mxu0 %v895
        %953 = vmatmul.f32.gmra.mxu0 %v889
        %v954 = vpop.f32.mrf.mxu0
        %v955 = vadd.f32 0.0, %v954
        %956 = vdwg.mxu0
        %v957 = vadd.f32 %v864, %v915
        %v958 = vadd.f32 %v865, %v935
        %v959 = vadd.f32 %v866, %v955
        %v960 = vld [vmem:[%s224] sm:$0xff]
        %s961 = scalar_lea.vmem %s229, 32
        %v962 = vld [vmem:[%s961] sm:$0xf]
        %964 = vst [vmem:[#allocation1] ss:$4 sm:$0xff] %v960
        %v965 = vld.sshfl [vmem:[#allocation1] sm:$0xff pattern:$0x73625140]
        %v966 = vld.sshfl [vmem:[#allocation1 + $0x8] sm:$0xff pattern:$0x73625140]
        %v967 = vld.sshfl [vmem:[#allocation1 + $0x10] sm:$0xff pattern:$0x73625140]
        %v968 = vld.sshfl [vmem:[#allocation1 + $0x18] sm:$0xff pattern:$0x73625140]
        %969 = vrot.lane.b32.xlu0 %v965, 90
        %v970 = vpop.permute.xlu0 %969
        %971 = vrot.lane.b32.xlu0 %v966, 90
        %v972 = vpop.permute.xlu0 %971
        %973 = vrot.lane.b32.xlu0 %v967, 90
        %v974 = vpop.permute.xlu0 %973
        %975 = vrot.lane.b32.xlu0 %v968, 90
        %v976 = vpop.permute.xlu0 %975
        %vm977 = vcmask 736256
        %v978 = vsel %vm977, %v970, %v972
        %v979 = vsel %vm977, %v972, %v974
        %v980 = vsel %vm977, %v974, %v976
        %v982 = vsel %vm257, %v962, 0
        %v984 = vsel %vm261, %v978, 0
        %v986 = vsel %vm261, %v979, 0
        %v988 = vsel %vm261, %v980, 0
        %990 = vmatpush.msra.mxu0 0.0
        %991 = vmatpush.msra.mxu0 0.0
        %992 = vmatpush.msra.mxu0 0.0
        %993 = vmatpush.msra.mxu0 0.0
        %994 = vmatpush.msra.mxu0 0.0
        %995 = vmatpush.msra.mxu0 0.0
        %996 = vmatpush.msra.mxu0 0.0
        %997 = vmatpush.msra.mxu0 0.0
        %998 = vmatpush.msra.mxu0 0.0
        %999 = vmatpush.msra.mxu0 0.0
        %1000 = vmatpush.msra.mxu0 0.0
        %1001 = vmatpush.msra.mxu0 0.0
        %1002 = vmatpush.msra.mxu0 0.0
        %1003 = vmatpush.msra.mxu0 0.0
        %1004 = vmatpush.msra.mxu0 0.0
        %1005 = vmatpush.msra.mxu0 %v984
        %1006 = vmatmul.f32.gmra.mxu0 %v982
        %v1007 = vpop.f32.mrf.mxu0
        %v1008 = vadd.f32 0.0, %v1007
        %1009 = vdwg.mxu0
        %1010 = vmatpush.msra.mxu0 0.0
        %1011 = vmatpush.msra.mxu0 0.0
        %1012 = vmatpush.msra.mxu0 0.0
        %1013 = vmatpush.msra.mxu0 0.0
        %1014 = vmatpush.msra.mxu0 0.0
        %1015 = vmatpush.msra.mxu0 0.0
        %1016 = vmatpush.msra.mxu0 0.0
        %1017 = vmatpush.msra.mxu0 0.0
        %1018 = vmatpush.msra.mxu0 0.0
        %1019 = vmatpush.msra.mxu0 0.0
        %1020 = vmatpush.msra.mxu0 0.0
        %1021 = vmatpush.msra.mxu0 0.0
        %1022 = vmatpush.msra.mxu0 0.0
        %1023 = vmatpush.msra.mxu0 0.0
        %1024 = vmatpush.msra.mxu0 0.0
        %1025 = vmatpush.msra.mxu0 %v986
        %1026 = vmatmul.f32.gmra.mxu0 %v982
        %v1027 = vpop.f32.mrf.mxu0
        %v1028 = vadd.f32 0.0, %v1027
        %1029 = vdwg.mxu0
        %1030 = vmatpush.msra.mxu0 0.0
        %1031 = vmatpush.msra.mxu0 0.0
        %1032 = vmatpush.msra.mxu0 0.0
        %1033 = vmatpush.msra.mxu0 0.0
        %1034 = vmatpush.msra.mxu0 0.0
        %1035 = vmatpush.msra.mxu0 0.0
        %1036 = vmatpush.msra.mxu0 0.0
        %1037 = vmatpush.msra.mxu0 0.0
        %1038 = vmatpush.msra.mxu0 0.0
        %1039 = vmatpush.msra.mxu0 0.0
        %1040 = vmatpush.msra.mxu0 0.0
        %1041 = vmatpush.msra.mxu0 0.0
        %1042 = vmatpush.msra.mxu0 0.0
        %1043 = vmatpush.msra.mxu0 0.0
        %1044 = vmatpush.msra.mxu0 0.0
        %1045 = vmatpush.msra.mxu0 %v988
        %1046 = vmatmul.f32.gmra.mxu0 %v982
        %v1047 = vpop.f32.mrf.mxu0
        %v1048 = vadd.f32 0.0, %v1047
        %1049 = vdwg.mxu0
        %v1050 = vadd.f32 %v957, %v1008
        %v1051 = vadd.f32 %v958, %v1028
        %v1052 = vadd.f32 %v959, %v1048
        %v1053 = vld [vmem:[%s233] sm:$0xf]
        %1055 = vset.pattern.permute.xlu0 0
        %1056 = vperm.xlu0 %1055, %v1053
        %v1057 = vpop.permute.xlu0 %1056
        %v1059 = vadd.f32 %v1050, %v1057
        %v1060 = vadd.f32 %v1051, %v1057
        %v1061 = vadd.f32 %v1052, %v1057
        %v1062 = vmax.f32 %v1059, 0.0
        %v1063 = vmax.f32 %v1060, 0.0
        %v1064 = vmax.f32 %v1061, 0.0
        %v1067 = vrot.slane %v1063, 4
        %vm1068 = vcmask 1043456
        %v1069 = vsel %vm1068, %v1062, %v1067
        %1071 = vst [vmem:[%s215] sm:$0xff] %v1069
        %1072 = vst [vmem:[%s215 + $0x8] sm:$0xf] %v1064
        %s1073 = sand.u32 %s119, 1
        %s1074 = scalar_lea.sflag [#allocation3], %s1073
        %s1075 = sand.u32 %s119, 1
        %s1076 = smul.addr %s1075, 12
        %s1077 = scalar_lea.vmem [#allocation2], %s1076
        // Predicated region
        $region33: #{tpu_custom_call.1} parent=31 // pred_check
          %p1078 = pneg %p129
        $region34: #{tpu_custom_call.1} parent=31 // pred_check_branch
          %1080 = sbr.rel (%p1078) target = $region36
        $region35: #{tpu_custom_call.1} parent=31 // pred_region
          %1082 = vsyncadd %s1074, 0
          %s1083 = smul.addr %s21, 3
          %s1084 = smul.addr %s22, 6
          %s1085 = sadd.s32 %s1083, %s1084
          %s1086 = smul.addr %s1085, 4
          %s1087 = scalar_lea.hbm %s3, %s1086
          %s1089 = sshll.u32 %s1077, 4
          %s1090 = int_to_ptr.vmem [resolvable:$true] %s1089
          %s1091 = sshll.u32 %s1087, 4
          %s1092 = int_to_ptr.hbm [resolvable:$true] %s1091
          %1094 = dma.vmem_to_hbm [thread:$0]  %s1090, 192, %s1092, %s1074
        $region36: #{tpu_custom_call.1} parent=31 // pred_fallthru
          _
      $region32: #{tpu_custom_call.1} parent=5 // pred_fallthru
        _
      %p1095 = scmp.le.s32.totalorder 2, %s12
      // Predicated region
      $region37: #{tpu_custom_call.1} parent=5 // pred_check
        %p1096 = pneg %p1095
      $region38: #{tpu_custom_call.1} parent=5 // pred_check_branch
        %1098 = sbr.rel (%p1096) target = $region40
      $region39: #{tpu_custom_call.1} parent=5 // pred_region
        %s1099 = ssub.s32 %s12, 2
        // Predicated region
        $region41: #{tpu_custom_call.1} parent=39 // pred_check
          %p1100 = pneg %p135
        $region42: #{tpu_custom_call.1} parent=39 // pred_check_branch
          %1102 = sbr.rel (%p1100) target = $region44
        $region43: #{tpu_custom_call.1} parent=39 // pred_region
          %s1103 = sand.u32 %s120, 1
          %s1104 = scalar_lea.sflag [#allocation3], %s1103
          %s1105 = sand.u32 %s120, 1
          %s1106 = smul.addr %s1105, 12
          %s1107 = scalar_lea.vmem [#allocation2], %s1106
          %1109 = dma.done %s1104, 192
        $region44: #{tpu_custom_call.1} parent=39 // pred_fallthru
          _
      $region40: #{tpu_custom_call.1} parent=5 // pred_fallthru
        _
    $region6: #{tpu_custom_call.1} parent=1 // loop_footer
      %s16 = sadd.s32 1, %s12
    $region7: #{tpu_custom_call.1} parent=1 // loop_footer_branch
      %11 = sbr.rel target = $region3
    $region8: #{tpu_custom_call.1} parent=1 // loop_exit
      _
    %1110 = vsyncpa [#allocation3], 1
    %s1111 = scalar_lea.sflag [#allocation3], 1
    %1112 = vsyncpa %s1111, 1

</llo_original>
